<compile_context>
chip_gen: v7x
topology: tpu7x:2x2x1
jax: 0.10.0
libtpu: 0.0.40
codegen_flags: <defaults>
</compile_context>

<pallas_src>
import jax
import jax.numpy as jnp
from jax.experimental import pallas as pl
from jax.experimental.pallas import tpu as pltpu

M_IN = 3      # `m` in the PyTorch module
D_OUT = 32    # `d` (latent dim) -- synthetic choice
BATCH = 16    # number of rows of x


def _linear_kernel(x_ref, wt_ref, b_ref, o_ref):
    # x_ref : (B, m)   wt_ref : (m, d)   b_ref : (1, d)   o_ref : (B, d)
    # Unrolled K=m outer-product on the VPU (no MXU round trip).
    x = x_ref[...]            # (B, m)
    wt = wt_ref[...]          # (m, d)
    m = x.shape[1]
    acc = x[:, 0:1] * wt[0:1, :]                    # (B,1) * (1,d) -> (B,d)
    for k in range(1, m):                           # static Python unroll (m == 3)
        acc = acc + x[:, k:k + 1] * wt[k:k + 1, :]
    o_ref[...] = acc + b_ref[...]                   # bias broadcast over batch


def prepare_params(weight, bias):
    """One-time parameter preprocessing (hoisted out of the per-call path).

    weight: (d, m)  [PyTorch nn.Linear layout]
    bias  : (d,)
    Returns wt: (m, d) f32, b2: (1, d) f32.
    """
    wt = jnp.asarray(weight, jnp.float32).T            # (m, d) lane-dense
    b2 = jnp.asarray(bias, jnp.float32).reshape(1, -1)  # (1, d)
    return wt, b2


def h_latent_space_forward(x, wt, b2):
    """y = x @ wt + b2  with pre-prepared params (wt: (m, d), b2: (1, d))."""
    B, m = x.shape
    d = wt.shape[1]
    return pl.pallas_call(
        _linear_kernel,
        out_shape=jax.ShapeDtypeStruct((B, d), jnp.float32),
        # Single program, full-array blocks resident in VMEM — no grid, no
        # per-step DMA/pipeline overhead.
        in_specs=[
            pl.BlockSpec(memory_space=pltpu.MemorySpace.VMEM),  # x  (B, m)
            pl.BlockSpec(memory_space=pltpu.MemorySpace.VMEM),  # wt (m, d)
            pl.BlockSpec(memory_space=pltpu.MemorySpace.VMEM),  # b  (1, d)
        ],
        out_specs=pl.BlockSpec(memory_space=pltpu.MemorySpace.VMEM),
    )(x, wt, b2)


if __name__ == "__main__":
    key = jax.random.PRNGKey(0)
    kx, kw, kb = jax.random.split(key, 3)

    # Deterministic synthetic parameters (shapes dictated by nn.Linear(m, d)).
    weight = jax.random.normal(kw, (D_OUT, M_IN), dtype=jnp.float32) * 0.1
    bias = jax.random.normal(kb, (D_OUT,), dtype=jnp.float32) * 0.01

    # Example input: batch of m-dimensional latent states (already f32).
    x = jax.random.normal(kx, (BATCH, M_IN), dtype=jnp.float32)

    # One-time parameter prep (transpose / reshape / casts hoisted out of the
    # per-call path).
    wt, b2 = prepare_params(weight, bias)

    y = h_latent_space_forward(x, wt, b2)
    y = jax.block_until_ready(y)

    # Reference check in plain JAX (f32 stand-in for the f64 PyTorch path).
    y_ref = x @ weight.T + bias
    assert y.shape == (BATCH, D_OUT)
    assert jnp.allclose(y, y_ref, atol=1e-5, rtol=1e-5), "mismatch vs reference"

    print("KERNEL_OK")
</pallas_src>

<mosaic_0001>
module attributes {stable_mosaic.version = 11 : i64} {
  func.func @_linear_kernel(%arg0: memref<16x3xf32, #tpu.memory_space<vmem>>, %arg1: memref<3x32xf32, #tpu.memory_space<vmem>>, %arg2: memref<1x32xf32, #tpu.memory_space<vmem>>, %arg3: memref<16x32xf32, #tpu.memory_space<vmem>>) attributes {dimension_semantics = [], scalar_prefetch = 0 : i64, scratch_operands = 0 : i64, tpu.core_type = #tpu.core_type<tc>} {
    %c0 = arith.constant 0 : index
    %c0_0 = arith.constant 0 : index
    %0 = vector.load %arg0[%c0, %c0_0] : memref<16x3xf32, #tpu.memory_space<vmem>>, vector<16x3xf32>
    %c0_1 = arith.constant 0 : index
    %c0_2 = arith.constant 0 : index
    %1 = vector.load %arg1[%c0_1, %c0_2] : memref<3x32xf32, #tpu.memory_space<vmem>>, vector<3x32xf32>
    %2 = vector.extract_strided_slice %0 {offsets = [0, 0], sizes = [16, 1], strides = [1, 1]} : vector<16x3xf32> to vector<16x1xf32>
    %3 = vector.extract_strided_slice %1 {offsets = [0, 0], sizes = [1, 32], strides = [1, 1]} : vector<3x32xf32> to vector<1x32xf32>
    %4 = vector.broadcast %2 : vector<16x1xf32> to vector<16x32xf32>
    %5 = vector.broadcast %3 : vector<1x32xf32> to vector<16x32xf32>
    %6 = arith.mulf %4, %5 : vector<16x32xf32>
    %7 = vector.extract_strided_slice %0 {offsets = [0, 1], sizes = [16, 1], strides = [1, 1]} : vector<16x3xf32> to vector<16x1xf32>
    %8 = vector.extract_strided_slice %1 {offsets = [1, 0], sizes = [1, 32], strides = [1, 1]} : vector<3x32xf32> to vector<1x32xf32>
    %9 = vector.broadcast %7 : vector<16x1xf32> to vector<16x32xf32>
    %10 = vector.broadcast %8 : vector<1x32xf32> to vector<16x32xf32>
    %11 = arith.mulf %9, %10 : vector<16x32xf32>
    %12 = arith.addf %6, %11 : vector<16x32xf32>
    %13 = vector.extract_strided_slice %0 {offsets = [0, 2], sizes = [16, 1], strides = [1, 1]} : vector<16x3xf32> to vector<16x1xf32>
    %14 = vector.extract_strided_slice %1 {offsets = [2, 0], sizes = [1, 32], strides = [1, 1]} : vector<3x32xf32> to vector<1x32xf32>
    %15 = vector.broadcast %13 : vector<16x1xf32> to vector<16x32xf32>
    %16 = vector.broadcast %14 : vector<1x32xf32> to vector<16x32xf32>
    %17 = arith.mulf %15, %16 : vector<16x32xf32>
    %18 = arith.addf %12, %17 : vector<16x32xf32>
    %c0_3 = arith.constant 0 : index
    %c0_4 = arith.constant 0 : index
    %19 = vector.load %arg2[%c0_3, %c0_4] : memref<1x32xf32, #tpu.memory_space<vmem>>, vector<1x32xf32>
    %20 = vector.broadcast %19 : vector<1x32xf32> to vector<16x32xf32>
    %21 = arith.addf %18, %20 : vector<16x32xf32>
    %c0_5 = arith.constant 0 : index
    %c0_6 = arith.constant 0 : index
    %22 = vector.load %arg3[%c0_5, %c0_6] : memref<16x32xf32, #tpu.memory_space<vmem>>, vector<16x32xf32>
    tpu.vector_store %arg3[%c0_5, %c0_6], %21 {strides = array<i32>} : memref<16x32xf32, #tpu.memory_space<vmem>>, vector<16x32xf32>,
    return
  }
}

</mosaic_0001>

<llo_original>
// kernel: tpu_custom_call.1
$region0: #{tpu_custom_call.1}
  #allocation0 [shape = 'u32[]', space=smem, size = 0x4, offset = 0x4, fixed_abs, tag = 'smem constant byte address 0x4 - core index']
  #allocation1 [shape = 'u32[144,128]{1,0:T(1,128)}', space=vmem, size = 0x12000, scoped, tag = 'internal scratch']
  %s0 = inlined_call_operand.vmem [shape: f32[16,3], index: 0, kind: input, shape index: {}]
  %s1 = inlined_call_operand.vmem [shape: f32[3,32], index: 1, kind: input, shape index: {}]
  %s2 = inlined_call_operand.vmem [shape: f32[1,32], index: 2, kind: input, shape index: {}]
  %s3 = inlined_call_operand.hbm [shape: f32[16,32], index: 3, kind: output, shape index: {}]
  %s4 = sld [smem:[#allocation0]]
  $region22: #{tpu_custom_call.1} parent=0
    _
  %s6 = ssub.s32 1, %s4
  %s7 = scalar_select 0, %s6, %s4
  $region1: #{tpu_custom_call.1} parent=0
    #allocation2 [shape = 'u8[8192]{0}', space=vmem, size = 0x2000, scoped, tag = 'output window, operand 0, single buffered']
    #allocation3 [shape = 's32[1]{0}', space=sflag, size = 0x4, scoped, tag = 'scoped memory for tpu_custom_call.1']
    %8 = vsyncpa [#allocation3], 0
    // Predicated region
    $region2: #{tpu_custom_call.1} parent=1 // pred_check
      _
    $region3: #{tpu_custom_call.1} parent=1 // pred_check_branch
      %10 = sbr.rel (0) target = $region5
    $region4: #{tpu_custom_call.1} parent=1 // pred_region
      _
    $region5: #{tpu_custom_call.1} parent=1 // pred_fallthru
      _
    // Predicated region
    $region6: #{tpu_custom_call.1} parent=1 // pred_check
      _
    $region7: #{tpu_custom_call.1} parent=1 // pred_check_branch
      %12 = sbr.rel (0) target = $region9
    $region8: #{tpu_custom_call.1} parent=1 // pred_region
      _
    $region9: #{tpu_custom_call.1} parent=1 // pred_fallthru
      _
    // Predicated region
    $region10: #{tpu_custom_call.1} parent=1 // pred_check
      _
    $region11: #{tpu_custom_call.1} parent=1 // pred_check_branch
      %14 = sbr.rel (0) target = $region13
    $region12: #{tpu_custom_call.1} parent=1 // pred_region
      _
    $region13: #{tpu_custom_call.1} parent=1 // pred_fallthru
      _
    %v15 = vld [vmem:[%s0] sm:$0xff]
    %v16 = vld [vmem:[%s0 + $0x8] sm:$0xff]
    %v17 = vld [vmem:[%s1] sm:$0x7]
    %19 = vset.pattern.permute.xlu0 0
    %20 = vperm.xlu0 %19, %v15
    %v21 = vpop.permute.xlu0 %20
    %24 = vset.pattern.permute.xlu0 0
    %25 = vperm.xlu0 %24, %v16
    %v26 = vpop.permute.xlu0 %25
    %v28 = vlaneseq
    %v29 = vshrl.u32 %v28, 7
    %v30 = vsub.s32 0, %v29
    %v31 = vrot.slane %v17, %v30
    %v32 = vmul.f32 %v21, %v31
    %v33 = vmul.f32 %v26, %v31
    %34 = vset.pattern.permute.xlu0 1
    %35 = vperm.xlu0 %34, %v15
    %v36 = vpop.permute.xlu0 %35
    %38 = vset.pattern.permute.xlu0 1
    %39 = vperm.xlu0 %38, %v16
    %v40 = vpop.permute.xlu0 %39
    %v42 = vlaneseq
    %v43 = vshrl.u32 %v42, 7
    %v44 = vsub.s32 1, %v43
    %v45 = vrot.slane %v17, %v44
    %v46 = vmul.f32 %v36, %v45
    %v47 = vmul.f32 %v40, %v45
    %v48 = vadd.f32 %v32, %v46
    %v49 = vadd.f32 %v33, %v47
    %50 = vset.pattern.permute.xlu0 2
    %51 = vperm.xlu0 %50, %v15
    %v52 = vpop.permute.xlu0 %51
    %54 = vset.pattern.permute.xlu0 2
    %55 = vperm.xlu0 %54, %v16
    %v56 = vpop.permute.xlu0 %55
    %v58 = vlaneseq
    %v59 = vshrl.u32 %v58, 7
    %v60 = vsub.s32 2, %v59
    %v61 = vrot.slane %v17, %v60
    %v62 = vmul.f32 %v52, %v61
    %v63 = vmul.f32 %v56, %v61
    %v64 = vadd.f32 %v48, %v62
    %v65 = vadd.f32 %v49, %v63
    %v66 = vld [vmem:[%s2] sm:$0x1]
    %v68 = vlaneseq
    %v69 = vshrl.u32 %v68, 7
    %v70 = vsub.s32 0, %v69
    %v71 = vrot.slane %v66, %v70
    %v73 = vadd.f32 %v64, %v71
    %v74 = vadd.f32 %v65, %v71
    %vm75 = vcmask 261120
    %76 = vst.msk [vmem:[#allocation2] sm:$0xff] %vm75, %v73
    %77 = vst.msk [vmem:[#allocation2 + $0x8] sm:$0xff] %vm75, %v74
    // Predicated region
    $region14: #{tpu_custom_call.1} parent=1 // pred_check
      _
    $region15: #{tpu_custom_call.1} parent=1 // pred_check_branch
      %79 = sbr.rel (0) target = $region17
    $region16: #{tpu_custom_call.1} parent=1 // pred_region
      %s81 = ssub.s32 256, 256
      %82 = vsyncadd [#allocation3], %s81
      %s83 = sshll.u32 [#allocation2], 4
      %s84 = int_to_ptr.vmem [resolvable:$true] %s83
      %89 = dma.vmem_to_hbm [thread:$0]  %s84, 256, %s3, [#allocation3], 128, 128, 8
    $region17: #{tpu_custom_call.1} parent=1 // pred_fallthru
      _
    // Predicated region
    $region18: #{tpu_custom_call.1} parent=1 // pred_check
      _
    $region19: #{tpu_custom_call.1} parent=1 // pred_check_branch
      %91 = sbr.rel (0) target = $region21
    $region20: #{tpu_custom_call.1} parent=1 // pred_region
      %92 = dma.done [#allocation3], 256
    $region21: #{tpu_custom_call.1} parent=1 // pred_fallthru
      _
    %93 = vsyncpa [#allocation3], 1

</llo_original>
